<compile_context>
chip_gen: v7x
topology: tpu7x:2x2x1
jax: 0.10.0
libtpu: 0.0.40
codegen_flags: <defaults>
</compile_context>

<pallas_src>
import jax
import jax.numpy as jnp
from jax import lax
from jax.experimental import pallas as pl
from jax.experimental.pallas import tpu as pltpu


def decoder_rnn_kernel(tok_ref, h0_ref, emb_ref, wih_ref, whh_ref, b_ref,
                       wln_ref, bln_ref, logp_ref, hfin_ref):
    # tok (T*B, 1) int32 time-major flat; h0 (B, H); emb_table (O, E);
    # W_ih (E, H); W_hh (H, H); b (1, H) = b_ih + b_hh;
    # W_ln (H, O_pad); b_ln (1, O_pad). Outputs: logp (B, O_pad), hfin (B, H).
    TB = tok_ref.shape[0]
    B = h0_ref.shape[0]
    T = TB // B
    O = emb_ref.shape[0]

    # --- fused embedding gather: exact one-hot row selection on the MXU ---
    tok = tok_ref[...]                                                        # (TB, 1)
    onehot = (tok == lax.broadcasted_iota(jnp.int32, (TB, O), 1)).astype(jnp.float32)
    emb = jnp.dot(onehot, emb_ref[...], preferred_element_type=jnp.float32)   # (TB, E)

    # --- hoisted input projection + bias: ONE matmul for all timesteps ---
    xw = jnp.dot(emb, wih_ref[...], preferred_element_type=jnp.float32) + b_ref[...]  # (TB, H)

    # --- recurrence: statically unrolled (T is small/static), h lives in vregs ---
    h = jnp.tanh(xw[0:B, :] +
                 jnp.dot(h0_ref[...], whh_ref[...], preferred_element_type=jnp.float32))
    h1 = h                                    # output[:, 0, :] — feeds the head
    for t in range(1, T):                     # empty when T == 1 -> hfin == h1
        h = jnp.tanh(xw[t * B:(t + 1) * B, :] +
                     jnp.dot(h, whh_ref[...], preferred_element_type=jnp.float32))
    hfin_ref[...] = h

    # --- output head: Linear + LogSoftmax (pad lanes: bias -1e30 -> exp == 0) ---
    logits = jnp.dot(h1, wln_ref[...], preferred_element_type=jnp.float32) + bln_ref[...]
    m = jnp.max(logits, axis=-1, keepdims=True)
    lse = jnp.log(jnp.sum(jnp.exp(logits - m), axis=-1, keepdims=True)) + m
    logp_ref[...] = logits - lse


@jax.jit
def decoder_forward(tokens, hidden, params):
    """tokens: (B, T) int32 ; hidden: (1, B, H) f32 -> (log_probs (B, O), hidden (1, B, H))."""
    emb_table, w_ih, w_hh, b_sum, w_ln_p, b_ln_p = params
    B, T = tokens.shape
    O = emb_table.shape[0]
    H = w_hh.shape[0]
    O_pad = w_ln_p.shape[1]

    # TODO(synk): training-mode dropout (random mask) is not applied; eval semantics used.
    tok_tm = tokens.astype(jnp.int32).T.reshape(T * B, 1)    # time-major flat (tiny int32)
    h0 = hidden[0]                                           # (B, H)

    vmem = pl.BlockSpec(memory_space=pltpu.MemorySpace.VMEM)
    logp_pad, h_fin = pl.pallas_call(
        decoder_rnn_kernel,
        out_shape=(jax.ShapeDtypeStruct((B, O_pad), jnp.float32),
                   jax.ShapeDtypeStruct((B, H), jnp.float32)),
        in_specs=[vmem] * 8,
        out_specs=(vmem, vmem),
        input_output_aliases={1: 1},     # reuse the h0 buffer for the final hidden state
    )(tok_tm, h0, emb_table, w_ih, w_hh, b_sum, w_ln_p, b_ln_p)

    return logp_pad[:, :O], h_fin[None, :, :]


def init_params(key, output_size, emb_size, hidden_size):
    ks = jax.random.split(key, 7)
    scale = 0.1
    emb_table = scale * jax.random.normal(ks[0], (output_size, emb_size), jnp.float32)
    w_ih = scale * jax.random.normal(ks[1], (emb_size, hidden_size), jnp.float32)     # (E, H)
    w_hh = scale * jax.random.normal(ks[2], (hidden_size, hidden_size), jnp.float32)  # (H, H)
    b_ih = scale * jax.random.normal(ks[3], (hidden_size,), jnp.float32)
    b_hh = scale * jax.random.normal(ks[4], (hidden_size,), jnp.float32)
    b_sum = (b_ih + b_hh)[None, :]                                                    # (1, H)
    w_ln = scale * jax.random.normal(ks[5], (hidden_size, output_size), jnp.float32)  # (H, O)
    b_ln = scale * jax.random.normal(ks[6], (output_size,), jnp.float32)              # (O,)

    # Lane-dense head: pad O up to a multiple of 128 lanes. Pad lanes get zero
    # weight and a -1e30 bias so they contribute exactly 0 to the softmax sum.
    o_pad = ((output_size + 127) // 128) * 128
    w_ln_p = jnp.zeros((hidden_size, o_pad), jnp.float32).at[:, :output_size].set(w_ln)
    b_ln_p = jnp.full((1, o_pad), -1e30, jnp.float32).at[0, :output_size].set(b_ln)
    return (emb_table, w_ih, w_hh, b_sum, w_ln_p, b_ln_p)


def decoder_reference(tokens, hidden, params):
    """Pure-JAX reference matching PyTorch semantics (eval mode)."""
    emb_table, w_ih, w_hh, b_sum, w_ln_p, b_ln_p = params
    O = emb_table.shape[0]
    w_ln = w_ln_p[:, :O]
    b_ln = b_ln_p[:, :O]
    embedded = jnp.take(emb_table, tokens, axis=0)  # (B, T, E)
    h = hidden[0]
    T = tokens.shape[1]
    outs = []
    for t in range(T):
        h = jnp.tanh(embedded[:, t, :] @ w_ih + h @ w_hh + b_sum)
        outs.append(h)
    logits = outs[0] @ w_ln + b_ln
    logp = logits - jax.scipy.special.logsumexp(logits, axis=-1, keepdims=True)
    return logp, h[None, :, :]


if __name__ == "__main__":
    # Small, module-consistent sizes.
    batch, seq = 2, 8
    emb_size, decoder_hidden_size, output_size = 32, 32, 64

    key = jax.random.PRNGKey(0)
    k_par, k_tok, k_h = jax.random.split(key, 3)
    params = init_params(k_par, output_size, emb_size, decoder_hidden_size)

    tokens = jax.random.randint(k_tok, (batch, seq), 0, output_size, dtype=jnp.int32)
    hidden0 = 0.1 * jax.random.normal(k_h, (1, batch, decoder_hidden_size), jnp.float32)

    logp, h_out = decoder_forward(tokens, hidden0, params)
    jax.block_until_ready((logp, h_out))

    logp_ref, h_ref = decoder_reference(tokens, hidden0, params)
    assert logp.shape == (batch, output_size)
    assert h_out.shape == (1, batch, decoder_hidden_size)
    assert jnp.allclose(logp, logp_ref, atol=1e-5, rtol=1e-5)
    assert jnp.allclose(h_out, h_ref, atol=1e-5, rtol=1e-5)

    print("KERNEL_OK")
</pallas_src>

<mosaic_0001>
module attributes {stable_mosaic.version = 11 : i64} {
  func.func @decoder_rnn_kernel(%arg0: memref<16x1xi32, #tpu.memory_space<vmem>>, %arg1: memref<2x32xf32, #tpu.memory_space<vmem>>, %arg2: memref<64x32xf32, #tpu.memory_space<vmem>>, %arg3: memref<32x32xf32, #tpu.memory_space<vmem>>, %arg4: memref<32x32xf32, #tpu.memory_space<vmem>>, %arg5: memref<1x32xf32, #tpu.memory_space<vmem>>, %arg6: memref<32x128xf32, #tpu.memory_space<vmem>>, %arg7: memref<1x128xf32, #tpu.memory_space<vmem>>, %arg8: memref<2x128xf32, #tpu.memory_space<vmem>>, %arg9: memref<2x32xf32, #tpu.memory_space<vmem>>) attributes {dimension_semantics = [], scalar_prefetch = 0 : i64, scratch_operands = 0 : i64, tpu.core_type = #tpu.core_type<tc>} {
    %c0 = arith.constant 0 : index
    %c0_0 = arith.constant 0 : index
    %0 = vector.load %arg0[%c0, %c0_0] : memref<16x1xi32, #tpu.memory_space<vmem>>, vector<16x1xi32>
    %1 = tpu.iota {dimensions = array<i32: 1>} : vector<16x64xi32>
    %2 = vector.broadcast %0 : vector<16x1xi32> to vector<16x64xi32>
    %3 = arith.cmpi eq, %2, %1 : vector<16x64xi32>
    %4 = arith.extui %3 : vector<16x64xi1> to vector<16x64xi32>
    %5 = arith.sitofp %4 : vector<16x64xi32> to vector<16x64xf32>
    %c0_1 = arith.constant 0 : index
    %c0_2 = arith.constant 0 : index
    %6 = vector.load %arg2[%c0_1, %c0_2] : memref<64x32xf32, #tpu.memory_space<vmem>>, vector<64x32xf32>
    %cst = arith.constant dense<0.000000e+00> : vector<16x32xf32>
    %7 = tpu.matmul %5, %6, %cst {dimension_numbers = #tpu.dot_dimension_numbers<[1], [0], [0], [1], [0, 0, 1, 1], [], []>} : vector<16x64xf32>, vector<64x32xf32>, vector<16x32xf32> -> vector<16x32xf32>
    %c0_3 = arith.constant 0 : index
    %c0_4 = arith.constant 0 : index
    %8 = vector.load %arg3[%c0_3, %c0_4] : memref<32x32xf32, #tpu.memory_space<vmem>>, vector<32x32xf32>
    %cst_5 = arith.constant dense<0.000000e+00> : vector<16x32xf32>
    %9 = tpu.matmul %7, %8, %cst_5 {dimension_numbers = #tpu.dot_dimension_numbers<[1], [0], [0], [1], [0, 0, 1, 1], [], []>} : vector<16x32xf32>, vector<32x32xf32>, vector<16x32xf32> -> vector<16x32xf32>
    %c0_6 = arith.constant 0 : index
    %c0_7 = arith.constant 0 : index
    %10 = vector.load %arg5[%c0_6, %c0_7] : memref<1x32xf32, #tpu.memory_space<vmem>>, vector<1x32xf32>
    %11 = vector.broadcast %10 : vector<1x32xf32> to vector<16x32xf32>
    %12 = arith.addf %9, %11 : vector<16x32xf32>
    %13 = vector.extract_strided_slice %12 {offsets = [0, 0], sizes = [2, 32], strides = [1, 1]} : vector<16x32xf32> to vector<2x32xf32>
    %c0_8 = arith.constant 0 : index
    %c0_9 = arith.constant 0 : index
    %14 = vector.load %arg1[%c0_8, %c0_9] : memref<2x32xf32, #tpu.memory_space<vmem>>, vector<2x32xf32>
    %c0_10 = arith.constant 0 : index
    %c0_11 = arith.constant 0 : index
    %15 = vector.load %arg4[%c0_10, %c0_11] : memref<32x32xf32, #tpu.memory_space<vmem>>, vector<32x32xf32>
    %cst_12 = arith.constant dense<0.000000e+00> : vector<2x32xf32>
    %16 = tpu.matmul %14, %15, %cst_12 {dimension_numbers = #tpu.dot_dimension_numbers<[1], [0], [0], [1], [0, 0, 1, 1], [], []>} : vector<2x32xf32>, vector<32x32xf32>, vector<2x32xf32> -> vector<2x32xf32>
    %17 = arith.addf %13, %16 : vector<2x32xf32>
    %18 = math.tanh %17 : vector<2x32xf32>
    %19 = vector.extract_strided_slice %12 {offsets = [2, 0], sizes = [2, 32], strides = [1, 1]} : vector<16x32xf32> to vector<2x32xf32>
    %c0_13 = arith.constant 0 : index
    %c0_14 = arith.constant 0 : index
    %20 = vector.load %arg4[%c0_13, %c0_14] : memref<32x32xf32, #tpu.memory_space<vmem>>, vector<32x32xf32>
    %cst_15 = arith.constant dense<0.000000e+00> : vector<2x32xf32>
    %21 = tpu.matmul %18, %20, %cst_15 {dimension_numbers = #tpu.dot_dimension_numbers<[1], [0], [0], [1], [0, 0, 1, 1], [], []>} : vector<2x32xf32>, vector<32x32xf32>, vector<2x32xf32> -> vector<2x32xf32>
    %22 = arith.addf %19, %21 : vector<2x32xf32>
    %23 = math.tanh %22 : vector<2x32xf32>
    %24 = vector.extract_strided_slice %12 {offsets = [4, 0], sizes = [2, 32], strides = [1, 1]} : vector<16x32xf32> to vector<2x32xf32>
    %c0_16 = arith.constant 0 : index
    %c0_17 = arith.constant 0 : index
    %25 = vector.load %arg4[%c0_16, %c0_17] : memref<32x32xf32, #tpu.memory_space<vmem>>, vector<32x32xf32>
    %cst_18 = arith.constant dense<0.000000e+00> : vector<2x32xf32>
    %26 = tpu.matmul %23, %25, %cst_18 {dimension_numbers = #tpu.dot_dimension_numbers<[1], [0], [0], [1], [0, 0, 1, 1], [], []>} : vector<2x32xf32>, vector<32x32xf32>, vector<2x32xf32> -> vector<2x32xf32>
    %27 = arith.addf %24, %26 : vector<2x32xf32>
    %28 = math.tanh %27 : vector<2x32xf32>
    %29 = vector.extract_strided_slice %12 {offsets = [6, 0], sizes = [2, 32], strides = [1, 1]} : vector<16x32xf32> to vector<2x32xf32>
    %c0_19 = arith.constant 0 : index
    %c0_20 = arith.constant 0 : index
    %30 = vector.load %arg4[%c0_19, %c0_20] : memref<32x32xf32, #tpu.memory_space<vmem>>, vector<32x32xf32>
    %cst_21 = arith.constant dense<0.000000e+00> : vector<2x32xf32>
    %31 = tpu.matmul %28, %30, %cst_21 {dimension_numbers = #tpu.dot_dimension_numbers<[1], [0], [0], [1], [0, 0, 1, 1], [], []>} : vector<2x32xf32>, vector<32x32xf32>, vector<2x32xf32> -> vector<2x32xf32>
    %32 = arith.addf %29, %31 : vector<2x32xf32>
    %33 = math.tanh %32 : vector<2x32xf32>
    %34 = vector.extract_strided_slice %12 {offsets = [8, 0], sizes = [2, 32], strides = [1, 1]} : vector<16x32xf32> to vector<2x32xf32>
    %c0_22 = arith.constant 0 : index
    %c0_23 = arith.constant 0 : index
    %35 = vector.load %arg4[%c0_22, %c0_23] : memref<32x32xf32, #tpu.memory_space<vmem>>, vector<32x32xf32>
    %cst_24 = arith.constant dense<0.000000e+00> : vector<2x32xf32>
    %36 = tpu.matmul %33, %35, %cst_24 {dimension_numbers = #tpu.dot_dimension_numbers<[1], [0], [0], [1], [0, 0, 1, 1], [], []>} : vector<2x32xf32>, vector<32x32xf32>, vector<2x32xf32> -> vector<2x32xf32>
    %37 = arith.addf %34, %36 : vector<2x32xf32>
    %38 = math.tanh %37 : vector<2x32xf32>
    %39 = vector.extract_strided_slice %12 {offsets = [10, 0], sizes = [2, 32], strides = [1, 1]} : vector<16x32xf32> to vector<2x32xf32>
    %c0_25 = arith.constant 0 : index
    %c0_26 = arith.constant 0 : index
    %40 = vector.load %arg4[%c0_25, %c0_26] : memref<32x32xf32, #tpu.memory_space<vmem>>, vector<32x32xf32>
    %cst_27 = arith.constant dense<0.000000e+00> : vector<2x32xf32>
    %41 = tpu.matmul %38, %40, %cst_27 {dimension_numbers = #tpu.dot_dimension_numbers<[1], [0], [0], [1], [0, 0, 1, 1], [], []>} : vector<2x32xf32>, vector<32x32xf32>, vector<2x32xf32> -> vector<2x32xf32>
    %42 = arith.addf %39, %41 : vector<2x32xf32>
    %43 = math.tanh %42 : vector<2x32xf32>
    %44 = vector.extract_strided_slice %12 {offsets = [12, 0], sizes = [2, 32], strides = [1, 1]} : vector<16x32xf32> to vector<2x32xf32>
    %c0_28 = arith.constant 0 : index
    %c0_29 = arith.constant 0 : index
    %45 = vector.load %arg4[%c0_28, %c0_29] : memref<32x32xf32, #tpu.memory_space<vmem>>, vector<32x32xf32>
    %cst_30 = arith.constant dense<0.000000e+00> : vector<2x32xf32>
    %46 = tpu.matmul %43, %45, %cst_30 {dimension_numbers = #tpu.dot_dimension_numbers<[1], [0], [0], [1], [0, 0, 1, 1], [], []>} : vector<2x32xf32>, vector<32x32xf32>, vector<2x32xf32> -> vector<2x32xf32>
    %47 = arith.addf %44, %46 : vector<2x32xf32>
    %48 = math.tanh %47 : vector<2x32xf32>
    %49 = vector.extract_strided_slice %12 {offsets = [14, 0], sizes = [2, 32], strides = [1, 1]} : vector<16x32xf32> to vector<2x32xf32>
    %c0_31 = arith.constant 0 : index
    %c0_32 = arith.constant 0 : index
    %50 = vector.load %arg4[%c0_31, %c0_32] : memref<32x32xf32, #tpu.memory_space<vmem>>, vector<32x32xf32>
    %cst_33 = arith.constant dense<0.000000e+00> : vector<2x32xf32>
    %51 = tpu.matmul %48, %50, %cst_33 {dimension_numbers = #tpu.dot_dimension_numbers<[1], [0], [0], [1], [0, 0, 1, 1], [], []>} : vector<2x32xf32>, vector<32x32xf32>, vector<2x32xf32> -> vector<2x32xf32>
    %52 = arith.addf %49, %51 : vector<2x32xf32>
    %53 = math.tanh %52 : vector<2x32xf32>
    %c0_34 = arith.constant 0 : index
    %c0_35 = arith.constant 0 : index
    %54 = vector.load %arg9[%c0_34, %c0_35] : memref<2x32xf32, #tpu.memory_space<vmem>>, vector<2x32xf32>
    tpu.vector_store %arg9[%c0_34, %c0_35], %53 {strides = array<i32>} : memref<2x32xf32, #tpu.memory_space<vmem>>, vector<2x32xf32>,
    %c0_36 = arith.constant 0 : index
    %c0_37 = arith.constant 0 : index
    %55 = vector.load %arg6[%c0_36, %c0_37] : memref<32x128xf32, #tpu.memory_space<vmem>>, vector<32x128xf32>
    %cst_38 = arith.constant dense<0.000000e+00> : vector<2x128xf32>
    %56 = tpu.matmul %18, %55, %cst_38 {dimension_numbers = #tpu.dot_dimension_numbers<[1], [0], [0], [1], [0, 0, 1, 1], [], []>} : vector<2x32xf32>, vector<32x128xf32>, vector<2x128xf32> -> vector<2x128xf32>
    %c0_39 = arith.constant 0 : index
    %c0_40 = arith.constant 0 : index
    %57 = vector.load %arg7[%c0_39, %c0_40] : memref<1x128xf32, #tpu.memory_space<vmem>>, vector<1x128xf32>
    %58 = vector.broadcast %57 : vector<1x128xf32> to vector<2x128xf32>
    %59 = arith.addf %56, %58 : vector<2x128xf32>
    %cst_41 = arith.constant dense<0xFF800000> : vector<2xf32>
    %60 = vector.multi_reduction <maximumf>, %59, %cst_41 [1] : vector<2x128xf32> to vector<2xf32>
    %61 = vector.shape_cast %60 : vector<2xf32> to vector<2x1xf32>
    %62 = vector.broadcast %61 : vector<2x1xf32> to vector<2x128xf32>
    %63 = arith.subf %59, %62 : vector<2x128xf32>
    %64 = math.exp %63 : vector<2x128xf32>
    %cst_42 = arith.constant dense<0.000000e+00> : vector<2xf32>
    %65 = vector.multi_reduction <add>, %64, %cst_42 [1] : vector<2x128xf32> to vector<2xf32>
    %66 = vector.shape_cast %65 : vector<2xf32> to vector<2x1xf32>
    %67 = math.log %66 : vector<2x1xf32>
    %68 = arith.addf %67, %61 : vector<2x1xf32>
    %69 = vector.broadcast %68 : vector<2x1xf32> to vector<2x128xf32>
    %70 = arith.subf %59, %69 : vector<2x128xf32>
    %c0_43 = arith.constant 0 : index
    %c0_44 = arith.constant 0 : index
    %71 = vector.load %arg8[%c0_43, %c0_44] : memref<2x128xf32, #tpu.memory_space<vmem>>, vector<2x128xf32>
    tpu.vector_store %arg8[%c0_43, %c0_44], %70 {strides = array<i32>} : memref<2x128xf32, #tpu.memory_space<vmem>>, vector<2x128xf32>,
    return
  }
}

</mosaic_0001>

<llo_original>
// kernel: decoder_forward.1
$region0: #{decoder_forward.1}
  #allocation0 [shape = 'u32[]', space=smem, size = 0x4, offset = 0x4, fixed_abs, tag = 'smem constant byte address 0x4 - core index']
  #allocation1 [shape = 'u32[144,128]{1,0:T(1,128)}', space=vmem, size = 0x12000, scoped, tag = 'internal scratch']
  %s0 = inlined_call_operand.vmem [shape: s32[16,1], index: 0, kind: input, shape index: {}]
  %s1 = inlined_call_operand.vmem [shape: f32[2,32], index: 1, kind: input, shape index: {}, may-alias: {1,9}]
  %s2 = inlined_call_operand.vmem [shape: f32[64,32], index: 2, kind: input, shape index: {}]
  %s3 = inlined_call_operand.vmem [shape: f32[32,32], index: 3, kind: input, shape index: {}]
  %s4 = inlined_call_operand.vmem [shape: f32[32,32], index: 4, kind: input, shape index: {}]
  %s5 = inlined_call_operand.vmem [shape: f32[1,32], index: 5, kind: input, shape index: {}]
  %s6 = inlined_call_operand.vmem [shape: f32[32,128], index: 6, kind: input, shape index: {}]
  %s7 = inlined_call_operand.vmem [shape: f32[1,128], index: 7, kind: input, shape index: {}]
  %s8 = inlined_call_operand.hbm [shape: f32[2,128], index: 8, kind: output, shape index: {0}]
  %s9 = inlined_call_operand.vmem [shape: f32[2,32], index: 9, kind: output, shape index: {1}, may-alias: {1,9}]
  %10 = xla_tuple %s8, %s9
  %s11 = sld [smem:[#allocation0]]
  $region50: #{decoder_forward.1} parent=0
    _
  %s13 = ssub.s32 1, %s11
  %s14 = scalar_select 0, %s13, %s11
  $region1: #{decoder_forward.1} parent=0
    #allocation2 [shape = 'u8[1024]{0}', space=vmem, size = 0x400, scoped, tag = 'output window, operand 0, single buffered']
    #allocation3 [shape = 's32[1]{0}', space=sflag, size = 0x4, scoped, tag = 'scoped memory for decoder_forward.1']
    %15 = vsyncpa [#allocation3], 0
    // Predicated region
    $region2: #{decoder_forward.1} parent=1 // pred_check
      _
    $region3: #{decoder_forward.1} parent=1 // pred_check_branch
      %17 = sbr.rel (0) target = $region5
    $region4: #{decoder_forward.1} parent=1 // pred_region
      _
    $region5: #{decoder_forward.1} parent=1 // pred_fallthru
      _
    // Predicated region
    $region6: #{decoder_forward.1} parent=1 // pred_check
      _
    $region7: #{decoder_forward.1} parent=1 // pred_check_branch
      %19 = sbr.rel (0) target = $region9
    $region8: #{decoder_forward.1} parent=1 // pred_region
      _
    $region9: #{decoder_forward.1} parent=1 // pred_fallthru
      _
    // Predicated region
    $region10: #{decoder_forward.1} parent=1 // pred_check
      _
    $region11: #{decoder_forward.1} parent=1 // pred_check_branch
      %21 = sbr.rel (0) target = $region13
    $region12: #{decoder_forward.1} parent=1 // pred_region
      _
    $region13: #{decoder_forward.1} parent=1 // pred_fallthru
      _
    // Predicated region
    $region14: #{decoder_forward.1} parent=1 // pred_check
      _
    $region15: #{decoder_forward.1} parent=1 // pred_check_branch
      %23 = sbr.rel (0) target = $region17
    $region16: #{decoder_forward.1} parent=1 // pred_region
      _
    $region17: #{decoder_forward.1} parent=1 // pred_fallthru
      _
    // Predicated region
    $region18: #{decoder_forward.1} parent=1 // pred_check
      _
    $region19: #{decoder_forward.1} parent=1 // pred_check_branch
      %25 = sbr.rel (0) target = $region21
    $region20: #{decoder_forward.1} parent=1 // pred_region
      _
    $region21: #{decoder_forward.1} parent=1 // pred_fallthru
      _
    // Predicated region
    $region22: #{decoder_forward.1} parent=1 // pred_check
      _
    $region23: #{decoder_forward.1} parent=1 // pred_check_branch
      %27 = sbr.rel (0) target = $region25
    $region24: #{decoder_forward.1} parent=1 // pred_region
      _
    $region25: #{decoder_forward.1} parent=1 // pred_fallthru
      _
    // Predicated region
    $region26: #{decoder_forward.1} parent=1 // pred_check
      _
    $region27: #{decoder_forward.1} parent=1 // pred_check_branch
      %29 = sbr.rel (0) target = $region29
    $region28: #{decoder_forward.1} parent=1 // pred_region
      _
    $region29: #{decoder_forward.1} parent=1 // pred_fallthru
      _
    // Predicated region
    $region30: #{decoder_forward.1} parent=1 // pred_check
      _
    $region31: #{decoder_forward.1} parent=1 // pred_check_branch
      %31 = sbr.rel (0) target = $region33
    $region32: #{decoder_forward.1} parent=1 // pred_region
      _
    $region33: #{decoder_forward.1} parent=1 // pred_fallthru
      _
    %v32 = vld [vmem:[%s0] sm:$0xff]
    %v33 = vld [vmem:[%s0 + $0x8] sm:$0xff]
    %v34 = vlaneseq
    %v35 = vand.u32 %v34, 127
    %36 = vset.pattern.permute.xlu0 0
    %37 = vperm.xlu0 %36, %v32
    %v38 = vpop.permute.xlu0 %37
    %39 = vset.pattern.permute.xlu0 0
    %40 = vperm.xlu0 %39, %v33
    %v41 = vpop.permute.xlu0 %40
    %vm42 = vcmp.eq.s32.totalorder %v38, %v35
    %vm43 = vcmp.eq.s32.totalorder %v41, %v35
    %v44 = vsel %vm42, 1, 0
    %v45 = vsel %vm43, 1, 0
    %v46 = vcvt.s32.f32 %v44
    %v47 = vcvt.s32.f32 %v45
    %v48 = vld [vmem:[%s2] sm:$0xff]
    %v49 = vld [vmem:[%s2 + $0x8] sm:$0xff]
    %v50 = vld [vmem:[%s2 + $0x10] sm:$0xff]
    %v51 = vld [vmem:[%s2 + $0x18] sm:$0xff]
    %v52 = vld [vmem:[%s2 + $0x20] sm:$0xff]
    %v53 = vld [vmem:[%s2 + $0x28] sm:$0xff]
    %v54 = vld [vmem:[%s2 + $0x30] sm:$0xff]
    %v55 = vld [vmem:[%s2 + $0x38] sm:$0xff]
    %vm56 = vcmask 523264
    %v58 = vsel %vm56, %v46, 0
    %v61 = vsel %vm56, %v47, 0
    %63 = vmatprep.subr.mxu0 0.0
    %64 = vmatpush1.msra.mxu0 %v48
    %65 = vmatprep.subr.mxu0 0.0
    %66 = vmatpush1.msra.mxu0 %v49
    %67 = vmatprep.subr.mxu0 0.0
    %68 = vmatpush1.msra.mxu0 %v50
    %69 = vmatprep.subr.mxu0 0.0
    %70 = vmatpush1.msra.mxu0 %v51
    %71 = vmatprep.subr.mxu0 0.0
    %72 = vmatpush1.msra.mxu0 %v52
    %73 = vmatprep.subr.mxu0 0.0
    %74 = vmatpush1.msra.mxu0 %v53
    %75 = vmatprep.subr.mxu0 0.0
    %76 = vmatpush1.msra.mxu0 %v54
    %77 = vmatprep.subr.mxu0 0.0
    %78 = vmatpush1.msra.mxu0 %v55
    %79 = vmatprep.subr.mxu0 0.0
    %80 = vmatpush1.msra.mxu0 0.0
    %81 = vmatprep.subr.mxu0 0.0
    %82 = vmatpush1.msra.mxu0 0.0
    %83 = vmatprep.subr.mxu0 0.0
    %84 = vmatpush1.msra.mxu0 0.0
    %85 = vmatprep.subr.mxu0 0.0
    %86 = vmatpush1.msra.mxu0 0.0
    %87 = vmatprep.subr.mxu0 0.0
    %88 = vmatpush1.msra.mxu0 0.0
    %89 = vmatprep.subr.mxu0 0.0
    %90 = vmatpush1.msra.mxu0 0.0
    %91 = vmatprep.subr.mxu0 0.0
    %92 = vmatpush1.msra.mxu0 0.0
    %93 = vmatprep.subr.mxu0 0.0
    %94 = vmatpush1.msra.mxu0 0.0
    %95 = vmatprep.subr.mxu0 0.0
    %96 = vmatpush1.msra.mxu0 0.0
    %97 = vmatprep.subr.mxu0 0.0
    %98 = vmatpush1.msra.mxu0 0.0
    %99 = vmatprep.subr.mxu0 0.0
    %100 = vmatpush1.msra.mxu0 0.0
    %101 = vmatprep.subr.mxu0 0.0
    %102 = vmatpush1.msra.mxu0 0.0
    %103 = vmatprep.subr.mxu0 0.0
    %104 = vmatpush1.msra.mxu0 0.0
    %105 = vmatprep.subr.mxu0 0.0
    %106 = vmatpush1.msra.mxu0 0.0
    %107 = vmatprep.subr.mxu0 0.0
    %108 = vmatpush1.msra.mxu0 0.0
    %109 = vmatprep.subr.mxu0 0.0
    %110 = vmatpush1.msra.mxu0 0.0
    %111 = vmatprep.subr.mxu0 0.0
    %112 = vmatpush1.msra.mxu0 0.0
    %113 = vmatprep.subr.mxu0 0.0
    %114 = vmatpush1.msra.mxu0 0.0
    %115 = vmatprep.subr.mxu0 0.0
    %116 = vmatpush1.msra.mxu0 0.0
    %117 = vmatprep.subr.mxu0 0.0
    %118 = vmatpush1.msra.mxu0 0.0
    %119 = vmatprep.subr.mxu0 0.0
    %120 = vmatpush1.msra.mxu0 0.0
    %121 = vmatprep.subr.mxu0 0.0
    %122 = vmatpush1.msra.mxu0 0.0
    %123 = vmatprep.subr.mxu0 0.0
    %124 = vmatpush1.msra.mxu0 0.0
    %125 = vmatprep.subr.mxu0 0.0
    %126 = vmatpush1.msra.mxu0 0.0
    %127 = vmatprep.mubr.f32.mxu0 0.0
    %128 = vmatmul.mubr.f32.gmra.mrb[0].mxu0 %v58
    %v129 = vpop.f32.mrb[0].mxu0
    %v130 = vadd.f32 0.0, %v129
    %v131 = vpop.f32.mrb[0].mxu0
    %132 = vmatprep.mubr.f32.mxu0 0.0
    %133 = vmatmul.mubr.f32.gmra.mrb[0].mxu0 %v61
    %v134 = vpop.f32.mrb[0].mxu0
    %v135 = vadd.f32 0.0, %v134
    %v136 = vpop.f32.mrb[0].mxu0
    %137 = vdwg.mxu0
    %v138 = vld [vmem:[%s3] sm:$0xff]
    %v139 = vld [vmem:[%s3 + $0x8] sm:$0xff]
    %v140 = vld [vmem:[%s3 + $0x10] sm:$0xff]
    %v141 = vld [vmem:[%s3 + $0x18] sm:$0xff]
    %v142 = vld [vmem:[%s5] sm:$0x1]
    %v144 = vlaneseq
    %v145 = vshrl.u32 %v144, 7
    %v146 = vsub.s32 0, %v145
    %v147 = vrot.slane %v142, %v146
    %vm149 = vcmask 261120
    %v151 = vsel %vm149, %v130, 0
    %v154 = vsel %vm149, %v135, 0
    %156 = vmatprep.subr.mxu0 0.0
    %157 = vmatpush1.msra.mxu0 %v138
    %158 = vmatprep.subr.mxu0 0.0
    %159 = vmatpush1.msra.mxu0 %v139
    %160 = vmatprep.subr.mxu0 0.0
    %161 = vmatpush1.msra.mxu0 %v140
    %162 = vmatprep.subr.mxu0 0.0
    %163 = vmatpush1.msra.mxu0 %v141
    %164 = vmatprep.subr.mxu0 0.0
    %165 = vmatpush1.msra.mxu0 0.0
    %166 = vmatprep.subr.mxu0 0.0
    %167 = vmatpush1.msra.mxu0 0.0
    %168 = vmatprep.subr.mxu0 0.0
    %169 = vmatpush1.msra.mxu0 0.0
    %170 = vmatprep.subr.mxu0 0.0
    %171 = vmatpush1.msra.mxu0 0.0
    %172 = vmatprep.subr.mxu0 0.0
    %173 = vmatpush1.msra.mxu0 0.0
    %174 = vmatprep.subr.mxu0 0.0
    %175 = vmatpush1.msra.mxu0 0.0
    %176 = vmatprep.subr.mxu0 0.0
    %177 = vmatpush1.msra.mxu0 0.0
    %178 = vmatprep.subr.mxu0 0.0
    %179 = vmatpush1.msra.mxu0 0.0
    %180 = vmatprep.subr.mxu0 0.0
    %181 = vmatpush1.msra.mxu0 0.0
    %182 = vmatprep.subr.mxu0 0.0
    %183 = vmatpush1.msra.mxu0 0.0
    %184 = vmatprep.subr.mxu0 0.0
    %185 = vmatpush1.msra.mxu0 0.0
    %186 = vmatprep.subr.mxu0 0.0
    %187 = vmatpush1.msra.mxu0 0.0
    %188 = vmatprep.subr.mxu0 0.0
    %189 = vmatpush1.msra.mxu0 0.0
    %190 = vmatprep.subr.mxu0 0.0
    %191 = vmatpush1.msra.mxu0 0.0
    %192 = vmatprep.subr.mxu0 0.0
    %193 = vmatpush1.msra.mxu0 0.0
    %194 = vmatprep.subr.mxu0 0.0
    %195 = vmatpush1.msra.mxu0 0.0
    %196 = vmatprep.subr.mxu0 0.0
    %197 = vmatpush1.msra.mxu0 0.0
    %198 = vmatprep.subr.mxu0 0.0
    %199 = vmatpush1.msra.mxu0 0.0
    %200 = vmatprep.subr.mxu0 0.0
    %201 = vmatpush1.msra.mxu0 0.0
    %202 = vmatprep.subr.mxu0 0.0
    %203 = vmatpush1.msra.mxu0 0.0
    %204 = vmatprep.subr.mxu0 0.0
    %205 = vmatpush1.msra.mxu0 0.0
    %206 = vmatprep.subr.mxu0 0.0
    %207 = vmatpush1.msra.mxu0 0.0
    %208 = vmatprep.subr.mxu0 0.0
    %209 = vmatpush1.msra.mxu0 0.0
    %210 = vmatprep.subr.mxu0 0.0
    %211 = vmatpush1.msra.mxu0 0.0
    %212 = vmatprep.subr.mxu0 0.0
    %213 = vmatpush1.msra.mxu0 0.0
    %214 = vmatprep.subr.mxu0 0.0
    %215 = vmatpush1.msra.mxu0 0.0
    %216 = vmatprep.subr.mxu0 0.0
    %217 = vmatpush1.msra.mxu0 0.0
    %218 = vmatprep.subr.mxu0 0.0
    %219 = vmatpush1.msra.mxu0 0.0
    %220 = vmatprep.mubr.f32.mxu0 0.0
    %221 = vmatmul.mubr.f32.gmra.mrb[0].mxu0 %v151
    %v222 = vpop.f32.mrb[0].mxu0
    %v223 = vadd.f32 %v147, %v222
    %v224 = vpop.f32.mrb[0].mxu0
    %225 = vmatprep.mubr.f32.mxu0 0.0
    %226 = vmatmul.mubr.f32.gmra.mrb[0].mxu0 %v154
    %v227 = vpop.f32.mrb[0].mxu0
    %v228 = vadd.f32 %v147, %v227
    %v229 = vpop.f32.mrb[0].mxu0
    %230 = vdwg.mxu0
    %v231 = vld [vmem:[%s1] sm:$0x3]
    %v232 = vld [vmem:[%s4] sm:$0xff]
    %v233 = vld [vmem:[%s4 + $0x8] sm:$0xff]
    %v234 = vld [vmem:[%s4 + $0x10] sm:$0xff]
    %v235 = vld [vmem:[%s4 + $0x18] sm:$0xff]
    %v237 = vsel %vm149, %v231, 0
    %239 = vmatprep.subr.mxu0 0.0
    %240 = vmatpush1.msra.mxu0 %v232
    %241 = vmatprep.subr.mxu0 0.0
    %242 = vmatpush1.msra.mxu0 %v233
    %243 = vmatprep.subr.mxu0 0.0
    %244 = vmatpush1.msra.mxu0 %v234
    %245 = vmatprep.subr.mxu0 0.0
    %246 = vmatpush1.msra.mxu0 %v235
    %247 = vmatprep.subr.mxu0 0.0
    %248 = vmatpush1.msra.mxu0 0.0
    %249 = vmatprep.subr.mxu0 0.0
    %250 = vmatpush1.msra.mxu0 0.0
    %251 = vmatprep.subr.mxu0 0.0
    %252 = vmatpush1.msra.mxu0 0.0
    %253 = vmatprep.subr.mxu0 0.0
    %254 = vmatpush1.msra.mxu0 0.0
    %255 = vmatprep.subr.mxu0 0.0
    %256 = vmatpush1.msra.mxu0 0.0
    %257 = vmatprep.subr.mxu0 0.0
    %258 = vmatpush1.msra.mxu0 0.0
    %259 = vmatprep.subr.mxu0 0.0
    %260 = vmatpush1.msra.mxu0 0.0
    %261 = vmatprep.subr.mxu0 0.0
    %262 = vmatpush1.msra.mxu0 0.0
    %263 = vmatprep.subr.mxu0 0.0
    %264 = vmatpush1.msra.mxu0 0.0
    %265 = vmatprep.subr.mxu0 0.0
    %266 = vmatpush1.msra.mxu0 0.0
    %267 = vmatprep.subr.mxu0 0.0
    %268 = vmatpush1.msra.mxu0 0.0
    %269 = vmatprep.subr.mxu0 0.0
    %270 = vmatpush1.msra.mxu0 0.0
    %271 = vmatprep.subr.mxu0 0.0
    %272 = vmatpush1.msra.mxu0 0.0
    %273 = vmatprep.subr.mxu0 0.0
    %274 = vmatpush1.msra.mxu0 0.0
    %275 = vmatprep.subr.mxu0 0.0
    %276 = vmatpush1.msra.mxu0 0.0
    %277 = vmatprep.subr.mxu0 0.0
    %278 = vmatpush1.msra.mxu0 0.0
    %279 = vmatprep.subr.mxu0 0.0
    %280 = vmatpush1.msra.mxu0 0.0
    %281 = vmatprep.subr.mxu0 0.0
    %282 = vmatpush1.msra.mxu0 0.0
    %283 = vmatprep.subr.mxu0 0.0
    %284 = vmatpush1.msra.mxu0 0.0
    %285 = vmatprep.subr.mxu0 0.0
    %286 = vmatpush1.msra.mxu0 0.0
    %287 = vmatprep.subr.mxu0 0.0
    %288 = vmatpush1.msra.mxu0 0.0
    %289 = vmatprep.subr.mxu0 0.0
    %290 = vmatpush1.msra.mxu0 0.0
    %291 = vmatprep.subr.mxu0 0.0
    %292 = vmatpush1.msra.mxu0 0.0
    %293 = vmatprep.subr.mxu0 0.0
    %294 = vmatpush1.msra.mxu0 0.0
    %295 = vmatprep.subr.mxu0 0.0
    %296 = vmatpush1.msra.mxu0 0.0
    %297 = vmatprep.subr.mxu0 0.0
    %298 = vmatpush1.msra.mxu0 0.0
    %299 = vmatprep.subr.mxu0 0.0
    %300 = vmatpush1.msra.mxu0 0.0
    %301 = vmatprep.subr.mxu0 0.0
    %302 = vmatpush1.msra.mxu0 0.0
    %303 = vmatprep.mubr.f32.mxu0 0.0
    %304 = vmatmul.mubr.f32.gmra.mrb[0].mxu0 %v237
    %v305 = vpop.f32.mrb[0].mxu0
    %v306 = vadd.f32 0.0, %v305
    %v307 = vpop.f32.mrb[0].mxu0
    %308 = vdwg.mxu0
    %v309 = vadd.f32 %v223, %v306
    %v310 = vtanh.pop %v309
    %v312 = vsel %vm149, %v310, 0
    %314 = vmatprep.subr.mxu0 0.0
    %315 = vmatpush1.msra.mxu0 %v232
    %316 = vmatprep.subr.mxu0 0.0
    %317 = vmatpush1.msra.mxu0 %v233
    %318 = vmatprep.subr.mxu0 0.0
    %319 = vmatpush1.msra.mxu0 %v234
    %320 = vmatprep.subr.mxu0 0.0
    %321 = vmatpush1.msra.mxu0 %v235
    %322 = vmatprep.subr.mxu0 0.0
    %323 = vmatpush1.msra.mxu0 0.0
    %324 = vmatprep.subr.mxu0 0.0
    %325 = vmatpush1.msra.mxu0 0.0
    %326 = vmatprep.subr.mxu0 0.0
    %327 = vmatpush1.msra.mxu0 0.0
    %328 = vmatprep.subr.mxu0 0.0
    %329 = vmatpush1.msra.mxu0 0.0
    %330 = vmatprep.subr.mxu0 0.0
    %331 = vmatpush1.msra.mxu0 0.0
    %332 = vmatprep.subr.mxu0 0.0
    %333 = vmatpush1.msra.mxu0 0.0
    %334 = vmatprep.subr.mxu0 0.0
    %335 = vmatpush1.msra.mxu0 0.0
    %336 = vmatprep.subr.mxu0 0.0
    %337 = vmatpush1.msra.mxu0 0.0
    %338 = vmatprep.subr.mxu0 0.0
    %339 = vmatpush1.msra.mxu0 0.0
    %340 = vmatprep.subr.mxu0 0.0
    %341 = vmatpush1.msra.mxu0 0.0
    %342 = vmatprep.subr.mxu0 0.0
    %343 = vmatpush1.msra.mxu0 0.0
    %344 = vmatprep.subr.mxu0 0.0
    %345 = vmatpush1.msra.mxu0 0.0
    %346 = vmatprep.subr.mxu0 0.0
    %347 = vmatpush1.msra.mxu0 0.0
    %348 = vmatprep.subr.mxu0 0.0
    %349 = vmatpush1.msra.mxu0 0.0
    %350 = vmatprep.subr.mxu0 0.0
    %351 = vmatpush1.msra.mxu0 0.0
    %352 = vmatprep.subr.mxu0 0.0
    %353 = vmatpush1.msra.mxu0 0.0
    %354 = vmatprep.subr.mxu0 0.0
    %355 = vmatpush1.msra.mxu0 0.0
    %356 = vmatprep.subr.mxu0 0.0
    %357 = vmatpush1.msra.mxu0 0.0
    %358 = vmatprep.subr.mxu0 0.0
    %359 = vmatpush1.msra.mxu0 0.0
    %360 = vmatprep.subr.mxu0 0.0
    %361 = vmatpush1.msra.mxu0 0.0
    %362 = vmatprep.subr.mxu0 0.0
    %363 = vmatpush1.msra.mxu0 0.0
    %364 = vmatprep.subr.mxu0 0.0
    %365 = vmatpush1.msra.mxu0 0.0
    %366 = vmatprep.subr.mxu0 0.0
    %367 = vmatpush1.msra.mxu0 0.0
    %368 = vmatprep.subr.mxu0 0.0
    %369 = vmatpush1.msra.mxu0 0.0
    %370 = vmatprep.subr.mxu0 0.0
    %371 = vmatpush1.msra.mxu0 0.0
    %372 = vmatprep.subr.mxu0 0.0
    %373 = vmatpush1.msra.mxu0 0.0
    %374 = vmatprep.subr.mxu0 0.0
    %375 = vmatpush1.msra.mxu0 0.0
    %376 = vmatprep.subr.mxu0 0.0
    %377 = vmatpush1.msra.mxu0 0.0
    %378 = vmatprep.mubr.f32.mxu0 0.0
    %379 = vmatmul.mubr.f32.gmra.mrb[0].mxu0 %v312
    %v380 = vpop.f32.mrb[0].mxu0
    %v381 = vadd.f32 0.0, %v380
    %v382 = vpop.f32.mrb[0].mxu0
    %383 = vdwg.mxu0
    %v385 = vrot.slane %v381, 6
    %v387 = vadd.f32 %v223, %v385
    %v388 = vtanh.pop %v387
    %v390 = vrot.slane %v388, 2
    %v391 = vsel %vm149, %v390, 0
    %393 = vmatprep.subr.mxu0 0.0
    %394 = vmatpush1.msra.mxu0 %v232
    %395 = vmatprep.subr.mxu0 0.0
    %396 = vmatpush1.msra.mxu0 %v233
    %397 = vmatprep.subr.mxu0 0.0
    %398 = vmatpush1.msra.mxu0 %v234
    %399 = vmatprep.subr.mxu0 0.0
    %400 = vmatpush1.msra.mxu0 %v235
    %401 = vmatprep.subr.mxu0 0.0
    %402 = vmatpush1.msra.mxu0 0.0
    %403 = vmatprep.subr.mxu0 0.0
    %404 = vmatpush1.msra.mxu0 0.0
    %405 = vmatprep.subr.mxu0 0.0
    %406 = vmatpush1.msra.mxu0 0.0
    %407 = vmatprep.subr.mxu0 0.0
    %408 = vmatpush1.msra.mxu0 0.0
    %409 = vmatprep.subr.mxu0 0.0
    %410 = vmatpush1.msra.mxu0 0.0
    %411 = vmatprep.subr.mxu0 0.0
    %412 = vmatpush1.msra.mxu0 0.0
    %413 = vmatprep.subr.mxu0 0.0
    %414 = vmatpush1.msra.mxu0 0.0
    %415 = vmatprep.subr.mxu0 0.0
    %416 = vmatpush1.msra.mxu0 0.0
    %417 = vmatprep.subr.mxu0 0.0
    %418 = vmatpush1.msra.mxu0 0.0
    %419 = vmatprep.subr.mxu0 0.0
    %420 = vmatpush1.msra.mxu0 0.0
    %421 = vmatprep.subr.mxu0 0.0
    %422 = vmatpush1.msra.mxu0 0.0
    %423 = vmatprep.subr.mxu0 0.0
    %424 = vmatpush1.msra.mxu0 0.0
    %425 = vmatprep.subr.mxu0 0.0
    %426 = vmatpush1.msra.mxu0 0.0
    %427 = vmatprep.subr.mxu0 0.0
    %428 = vmatpush1.msra.mxu0 0.0
    %429 = vmatprep.subr.mxu0 0.0
    %430 = vmatpush1.msra.mxu0 0.0
    %431 = vmatprep.subr.mxu0 0.0
    %432 = vmatpush1.msra.mxu0 0.0
    %433 = vmatprep.subr.mxu0 0.0
    %434 = vmatpush1.msra.mxu0 0.0
    %435 = vmatprep.subr.mxu0 0.0
    %436 = vmatpush1.msra.mxu0 0.0
    %437 = vmatprep.subr.mxu0 0.0
    %438 = vmatpush1.msra.mxu0 0.0
    %439 = vmatprep.subr.mxu0 0.0
    %440 = vmatpush1.msra.mxu0 0.0
    %441 = vmatprep.subr.mxu0 0.0
    %442 = vmatpush1.msra.mxu0 0.0
    %443 = vmatprep.subr.mxu0 0.0
    %444 = vmatpush1.msra.mxu0 0.0
    %445 = vmatprep.subr.mxu0 0.0
    %446 = vmatpush1.msra.mxu0 0.0
    %447 = vmatprep.subr.mxu0 0.0
    %448 = vmatpush1.msra.mxu0 0.0
    %449 = vmatprep.subr.mxu0 0.0
    %450 = vmatpush1.msra.mxu0 0.0
    %451 = vmatprep.subr.mxu0 0.0
    %452 = vmatpush1.msra.mxu0 0.0
    %453 = vmatprep.subr.mxu0 0.0
    %454 = vmatpush1.msra.mxu0 0.0
    %455 = vmatprep.subr.mxu0 0.0
    %456 = vmatpush1.msra.mxu0 0.0
    %457 = vmatprep.mubr.f32.mxu0 0.0
    %458 = vmatmul.mubr.f32.gmra.mrb[0].mxu0 %v391
    %v459 = vpop.f32.mrb[0].mxu0
    %v460 = vadd.f32 0.0, %v459
    %v461 = vpop.f32.mrb[0].mxu0
    %462 = vdwg.mxu0
    %v464 = vrot.slane %v460, 4
    %v466 = vadd.f32 %v223, %v464
    %v467 = vtanh.pop %v466
    %v469 = vrot.slane %v467, 4
    %v470 = vsel %vm149, %v469, 0
    %472 = vmatprep.subr.mxu0 0.0
    %473 = vmatpush1.msra.mxu0 %v232
    %474 = vmatprep.subr.mxu0 0.0
    %475 = vmatpush1.msra.mxu0 %v233
    %476 = vmatprep.subr.mxu0 0.0
    %477 = vmatpush1.msra.mxu0 %v234
    %478 = vmatprep.subr.mxu0 0.0
    %479 = vmatpush1.msra.mxu0 %v235
    %480 = vmatprep.subr.mxu0 0.0
    %481 = vmatpush1.msra.mxu0 0.0
    %482 = vmatprep.subr.mxu0 0.0
    %483 = vmatpush1.msra.mxu0 0.0
    %484 = vmatprep.subr.mxu0 0.0
    %485 = vmatpush1.msra.mxu0 0.0
    %486 = vmatprep.subr.mxu0 0.0
    %487 = vmatpush1.msra.mxu0 0.0
    %488 = vmatprep.subr.mxu0 0.0
    %489 = vmatpush1.msra.mxu0 0.0
    %490 = vmatprep.subr.mxu0 0.0
    %491 = vmatpush1.msra.mxu0 0.0
    %492 = vmatprep.subr.mxu0 0.0
    %493 = vmatpush1.msra.mxu0 0.0
    %494 = vmatprep.subr.mxu0 0.0
    %495 = vmatpush1.msra.mxu0 0.0
    %496 = vmatprep.subr.mxu0 0.0
    %497 = vmatpush1.msra.mxu0 0.0
    %498 = vmatprep.subr.mxu0 0.0
    %499 = vmatpush1.msra.mxu0 0.0
    %500 = vmatprep.subr.mxu0 0.0
    %501 = vmatpush1.msra.mxu0 0.0
    %502 = vmatprep.subr.mxu0 0.0
    %503 = vmatpush1.msra.mxu0 0.0
    %504 = vmatprep.subr.mxu0 0.0
    %505 = vmatpush1.msra.mxu0 0.0
    %506 = vmatprep.subr.mxu0 0.0
    %507 = vmatpush1.msra.mxu0 0.0
    %508 = vmatprep.subr.mxu0 0.0
    %509 = vmatpush1.msra.mxu0 0.0
    %510 = vmatprep.subr.mxu0 0.0
    %511 = vmatpush1.msra.mxu0 0.0
    %512 = vmatprep.subr.mxu0 0.0
    %513 = vmatpush1.msra.mxu0 0.0
    %514 = vmatprep.subr.mxu0 0.0
    %515 = vmatpush1.msra.mxu0 0.0
    %516 = vmatprep.subr.mxu0 0.0
    %517 = vmatpush1.msra.mxu0 0.0
    %518 = vmatprep.subr.mxu0 0.0
    %519 = vmatpush1.msra.mxu0 0.0
    %520 = vmatprep.subr.mxu0 0.0
    %521 = vmatpush1.msra.mxu0 0.0
    %522 = vmatprep.subr.mxu0 0.0
    %523 = vmatpush1.msra.mxu0 0.0
    %524 = vmatprep.subr.mxu0 0.0
    %525 = vmatpush1.msra.mxu0 0.0
    %526 = vmatprep.subr.mxu0 0.0
    %527 = vmatpush1.msra.mxu0 0.0
    %528 = vmatprep.subr.mxu0 0.0
    %529 = vmatpush1.msra.mxu0 0.0
    %530 = vmatprep.subr.mxu0 0.0
    %531 = vmatpush1.msra.mxu0 0.0
    %532 = vmatprep.subr.mxu0 0.0
    %533 = vmatpush1.msra.mxu0 0.0
    %534 = vmatprep.subr.mxu0 0.0
    %535 = vmatpush1.msra.mxu0 0.0
    %536 = vmatprep.mubr.f32.mxu0 0.0
    %537 = vmatmul.mubr.f32.gmra.mrb[0].mxu0 %v470
    %v538 = vpop.f32.mrb[0].mxu0
    %v539 = vadd.f32 0.0, %v538
    %v540 = vpop.f32.mrb[0].mxu0
    %541 = vdwg.mxu0
    %v543 = vrot.slane %v539, 2
    %v545 = vadd.f32 %v223, %v543
    %v546 = vtanh.pop %v545
    %v548 = vrot.slane %v546, 6
    %v549 = vsel %vm149, %v548, 0
    %551 = vmatprep.subr.mxu0 0.0
    %552 = vmatpush1.msra.mxu0 %v232
    %553 = vmatprep.subr.mxu0 0.0
    %554 = vmatpush1.msra.mxu0 %v233
    %555 = vmatprep.subr.mxu0 0.0
    %556 = vmatpush1.msra.mxu0 %v234
    %557 = vmatprep.subr.mxu0 0.0
    %558 = vmatpush1.msra.mxu0 %v235
    %559 = vmatprep.subr.mxu0 0.0
    %560 = vmatpush1.msra.mxu0 0.0
    %561 = vmatprep.subr.mxu0 0.0
    %562 = vmatpush1.msra.mxu0 0.0
    %563 = vmatprep.subr.mxu0 0.0
    %564 = vmatpush1.msra.mxu0 0.0
    %565 = vmatprep.subr.mxu0 0.0
    %566 = vmatpush1.msra.mxu0 0.0
    %567 = vmatprep.subr.mxu0 0.0
    %568 = vmatpush1.msra.mxu0 0.0
    %569 = vmatprep.subr.mxu0 0.0
    %570 = vmatpush1.msra.mxu0 0.0
    %571 = vmatprep.subr.mxu0 0.0
    %572 = vmatpush1.msra.mxu0 0.0
    %573 = vmatprep.subr.mxu0 0.0
    %574 = vmatpush1.msra.mxu0 0.0
    %575 = vmatprep.subr.mxu0 0.0
    %576 = vmatpush1.msra.mxu0 0.0
    %577 = vmatprep.subr.mxu0 0.0
    %578 = vmatpush1.msra.mxu0 0.0
    %579 = vmatprep.subr.mxu0 0.0
    %580 = vmatpush1.msra.mxu0 0.0
    %581 = vmatprep.subr.mxu0 0.0
    %582 = vmatpush1.msra.mxu0 0.0
    %583 = vmatprep.subr.mxu0 0.0
    %584 = vmatpush1.msra.mxu0 0.0
    %585 = vmatprep.subr.mxu0 0.0
    %586 = vmatpush1.msra.mxu0 0.0
    %587 = vmatprep.subr.mxu0 0.0
    %588 = vmatpush1.msra.mxu0 0.0
    %589 = vmatprep.subr.mxu0 0.0
    %590 = vmatpush1.msra.mxu0 0.0
    %591 = vmatprep.subr.mxu0 0.0
    %592 = vmatpush1.msra.mxu0 0.0
    %593 = vmatprep.subr.mxu0 0.0
    %594 = vmatpush1.msra.mxu0 0.0
    %595 = vmatprep.subr.mxu0 0.0
    %596 = vmatpush1.msra.mxu0 0.0
    %597 = vmatprep.subr.mxu0 0.0
    %598 = vmatpush1.msra.mxu0 0.0
    %599 = vmatprep.subr.mxu0 0.0
    %600 = vmatpush1.msra.mxu0 0.0
    %601 = vmatprep.subr.mxu0 0.0
    %602 = vmatpush1.msra.mxu0 0.0
    %603 = vmatprep.subr.mxu0 0.0
    %604 = vmatpush1.msra.mxu0 0.0
    %605 = vmatprep.subr.mxu0 0.0
    %606 = vmatpush1.msra.mxu0 0.0
    %607 = vmatprep.subr.mxu0 0.0
    %608 = vmatpush1.msra.mxu0 0.0
    %609 = vmatprep.subr.mxu0 0.0
    %610 = vmatpush1.msra.mxu0 0.0
    %611 = vmatprep.subr.mxu0 0.0
    %612 = vmatpush1.msra.mxu0 0.0
    %613 = vmatprep.subr.mxu0 0.0
    %614 = vmatpush1.msra.mxu0 0.0
    %615 = vmatprep.mubr.f32.mxu0 0.0
    %616 = vmatmul.mubr.f32.gmra.mrb[0].mxu0 %v549
    %v617 = vpop.f32.mrb[0].mxu0
    %v618 = vadd.f32 0.0, %v617
    %v619 = vpop.f32.mrb[0].mxu0
    %620 = vdwg.mxu0
    %v621 = vadd.f32 %v228, %v618
    %v622 = vtanh.pop %v621
    %v624 = vsel %vm149, %v622, 0
    %626 = vmatprep.subr.mxu0 0.0
    %627 = vmatpush1.msra.mxu0 %v232
    %628 = vmatprep.subr.mxu0 0.0
    %629 = vmatpush1.msra.mxu0 %v233
    %630 = vmatprep.subr.mxu0 0.0
    %631 = vmatpush1.msra.mxu0 %v234
    %632 = vmatprep.subr.mxu0 0.0
    %633 = vmatpush1.msra.mxu0 %v235
    %634 = vmatprep.subr.mxu0 0.0
    %635 = vmatpush1.msra.mxu0 0.0
    %636 = vmatprep.subr.mxu0 0.0
    %637 = vmatpush1.msra.mxu0 0.0
    %638 = vmatprep.subr.mxu0 0.0
    %639 = vmatpush1.msra.mxu0 0.0
    %640 = vmatprep.subr.mxu0 0.0
    %641 = vmatpush1.msra.mxu0 0.0
    %642 = vmatprep.subr.mxu0 0.0
    %643 = vmatpush1.msra.mxu0 0.0
    %644 = vmatprep.subr.mxu0 0.0
    %645 = vmatpush1.msra.mxu0 0.0
    %646 = vmatprep.subr.mxu0 0.0
    %647 = vmatpush1.msra.mxu0 0.0
    %648 = vmatprep.subr.mxu0 0.0
    %649 = vmatpush1.msra.mxu0 0.0
    %650 = vmatprep.subr.mxu0 0.0
    %651 = vmatpush1.msra.mxu0 0.0
    %652 = vmatprep.subr.mxu0 0.0
    %653 = vmatpush1.msra.mxu0 0.0
    %654 = vmatprep.subr.mxu0 0.0
    %655 = vmatpush1.msra.mxu0 0.0
    %656 = vmatprep.subr.mxu0 0.0
    %657 = vmatpush1.msra.mxu0 0.0
    %658 = vmatprep.subr.mxu0 0.0
    %659 = vmatpush1.msra.mxu0 0.0
    %660 = vmatprep.subr.mxu0 0.0
    %661 = vmatpush1.msra.mxu0 0.0
    %662 = vmatprep.subr.mxu0 0.0
    %663 = vmatpush1.msra.mxu0 0.0
    %664 = vmatprep.subr.mxu0 0.0
    %665 = vmatpush1.msra.mxu0 0.0
    %666 = vmatprep.subr.mxu0 0.0
    %667 = vmatpush1.msra.mxu0 0.0
    %668 = vmatprep.subr.mxu0 0.0
    %669 = vmatpush1.msra.mxu0 0.0
    %670 = vmatprep.subr.mxu0 0.0
    %671 = vmatpush1.msra.mxu0 0.0
    %672 = vmatprep.subr.mxu0 0.0
    %673 = vmatpush1.msra.mxu0 0.0
    %674 = vmatprep.subr.mxu0 0.0
    %675 = vmatpush1.msra.mxu0 0.0
    %676 = vmatprep.subr.mxu0 0.0
    %677 = vmatpush1.msra.mxu0 0.0
    %678 = vmatprep.subr.mxu0 0.0
    %679 = vmatpush1.msra.mxu0 0.0
    %680 = vmatprep.subr.mxu0 0.0
    %681 = vmatpush1.msra.mxu0 0.0
    %682 = vmatprep.subr.mxu0 0.0
    %683 = vmatpush1.msra.mxu0 0.0
    %684 = vmatprep.subr.mxu0 0.0
    %685 = vmatpush1.msra.mxu0 0.0
    %686 = vmatprep.subr.mxu0 0.0
    %687 = vmatpush1.msra.mxu0 0.0
    %688 = vmatprep.subr.mxu0 0.0
    %689 = vmatpush1.msra.mxu0 0.0
    %690 = vmatprep.mubr.f32.mxu0 0.0
    %691 = vmatmul.mubr.f32.gmra.mrb[0].mxu0 %v624
    %v692 = vpop.f32.mrb[0].mxu0
    %v693 = vadd.f32 0.0, %v692
    %v694 = vpop.f32.mrb[0].mxu0
    %695 = vdwg.mxu0
    %v697 = vrot.slane %v693, 6
    %v699 = vadd.f32 %v228, %v697
    %v700 = vtanh.pop %v699
    %v702 = vrot.slane %v700, 2
    %v703 = vsel %vm149, %v702, 0
    %705 = vmatprep.subr.mxu0 0.0
    %706 = vmatpush1.msra.mxu0 %v232
    %707 = vmatprep.subr.mxu0 0.0
    %708 = vmatpush1.msra.mxu0 %v233
    %709 = vmatprep.subr.mxu0 0.0
    %710 = vmatpush1.msra.mxu0 %v234
    %711 = vmatprep.subr.mxu0 0.0
    %712 = vmatpush1.msra.mxu0 %v235
    %713 = vmatprep.subr.mxu0 0.0
    %714 = vmatpush1.msra.mxu0 0.0
    %715 = vmatprep.subr.mxu0 0.0
    %716 = vmatpush1.msra.mxu0 0.0
    %717 = vmatprep.subr.mxu0 0.0
    %718 = vmatpush1.msra.mxu0 0.0
    %719 = vmatprep.subr.mxu0 0.0
    %720 = vmatpush1.msra.mxu0 0.0
    %721 = vmatprep.subr.mxu0 0.0
    %722 = vmatpush1.msra.mxu0 0.0
    %723 = vmatprep.subr.mxu0 0.0
    %724 = vmatpush1.msra.mxu0 0.0
    %725 = vmatprep.subr.mxu0 0.0
    %726 = vmatpush1.msra.mxu0 0.0
    %727 = vmatprep.subr.mxu0 0.0
    %728 = vmatpush1.msra.mxu0 0.0
    %729 = vmatprep.subr.mxu0 0.0
    %730 = vmatpush1.msra.mxu0 0.0
    %731 = vmatprep.subr.mxu0 0.0
    %732 = vmatpush1.msra.mxu0 0.0
    %733 = vmatprep.subr.mxu0 0.0
    %734 = vmatpush1.msra.mxu0 0.0
    %735 = vmatprep.subr.mxu0 0.0
    %736 = vmatpush1.msra.mxu0 0.0
    %737 = vmatprep.subr.mxu0 0.0
    %738 = vmatpush1.msra.mxu0 0.0
    %739 = vmatprep.subr.mxu0 0.0
    %740 = vmatpush1.msra.mxu0 0.0
    %741 = vmatprep.subr.mxu0 0.0
    %742 = vmatpush1.msra.mxu0 0.0
    %743 = vmatprep.subr.mxu0 0.0
    %744 = vmatpush1.msra.mxu0 0.0
    %745 = vmatprep.subr.mxu0 0.0
    %746 = vmatpush1.msra.mxu0 0.0
    %747 = vmatprep.subr.mxu0 0.0
    %748 = vmatpush1.msra.mxu0 0.0
    %749 = vmatprep.subr.mxu0 0.0
    %750 = vmatpush1.msra.mxu0 0.0
    %751 = vmatprep.subr.mxu0 0.0
    %752 = vmatpush1.msra.mxu0 0.0
    %753 = vmatprep.subr.mxu0 0.0
    %754 = vmatpush1.msra.mxu0 0.0
    %755 = vmatprep.subr.mxu0 0.0
    %756 = vmatpush1.msra.mxu0 0.0
    %757 = vmatprep.subr.mxu0 0.0
    %758 = vmatpush1.msra.mxu0 0.0
    %759 = vmatprep.subr.mxu0 0.0
    %760 = vmatpush1.msra.mxu0 0.0
    %761 = vmatprep.subr.mxu0 0.0
    %762 = vmatpush1.msra.mxu0 0.0
    %763 = vmatprep.subr.mxu0 0.0
    %764 = vmatpush1.msra.mxu0 0.0
    %765 = vmatprep.subr.mxu0 0.0
    %766 = vmatpush1.msra.mxu0 0.0
    %767 = vmatprep.subr.mxu0 0.0
    %768 = vmatpush1.msra.mxu0 0.0
    %769 = vmatprep.mubr.f32.mxu0 0.0
    %770 = vmatmul.mubr.f32.gmra.mrb[0].mxu0 %v703
    %v771 = vpop.f32.mrb[0].mxu0
    %v772 = vadd.f32 0.0, %v771
    %v773 = vpop.f32.mrb[0].mxu0
    %774 = vdwg.mxu0
    %v776 = vrot.slane %v772, 4
    %v778 = vadd.f32 %v228, %v776
    %v779 = vtanh.pop %v778
    %v781 = vrot.slane %v779, 4
    %v782 = vsel %vm149, %v781, 0
    %784 = vmatprep.subr.mxu0 0.0
    %785 = vmatpush1.msra.mxu0 %v232
    %786 = vmatprep.subr.mxu0 0.0
    %787 = vmatpush1.msra.mxu0 %v233
    %788 = vmatprep.subr.mxu0 0.0
    %789 = vmatpush1.msra.mxu0 %v234
    %790 = vmatprep.subr.mxu0 0.0
    %791 = vmatpush1.msra.mxu0 %v235
    %792 = vmatprep.subr.mxu0 0.0
    %793 = vmatpush1.msra.mxu0 0.0
    %794 = vmatprep.subr.mxu0 0.0
    %795 = vmatpush1.msra.mxu0 0.0
    %796 = vmatprep.subr.mxu0 0.0
    %797 = vmatpush1.msra.mxu0 0.0
    %798 = vmatprep.subr.mxu0 0.0
    %799 = vmatpush1.msra.mxu0 0.0
    %800 = vmatprep.subr.mxu0 0.0
    %801 = vmatpush1.msra.mxu0 0.0
    %802 = vmatprep.subr.mxu0 0.0
    %803 = vmatpush1.msra.mxu0 0.0
    %804 = vmatprep.subr.mxu0 0.0
    %805 = vmatpush1.msra.mxu0 0.0
    %806 = vmatprep.subr.mxu0 0.0
    %807 = vmatpush1.msra.mxu0 0.0
    %808 = vmatprep.subr.mxu0 0.0
    %809 = vmatpush1.msra.mxu0 0.0
    %810 = vmatprep.subr.mxu0 0.0
    %811 = vmatpush1.msra.mxu0 0.0
    %812 = vmatprep.subr.mxu0 0.0
    %813 = vmatpush1.msra.mxu0 0.0
    %814 = vmatprep.subr.mxu0 0.0
    %815 = vmatpush1.msra.mxu0 0.0
    %816 = vmatprep.subr.mxu0 0.0
    %817 = vmatpush1.msra.mxu0 0.0
    %818 = vmatprep.subr.mxu0 0.0
    %819 = vmatpush1.msra.mxu0 0.0
    %820 = vmatprep.subr.mxu0 0.0
    %821 = vmatpush1.msra.mxu0 0.0
    %822 = vmatprep.subr.mxu0 0.0
    %823 = vmatpush1.msra.mxu0 0.0
    %824 = vmatprep.subr.mxu0 0.0
    %825 = vmatpush1.msra.mxu0 0.0
    %826 = vmatprep.subr.mxu0 0.0
    %827 = vmatpush1.msra.mxu0 0.0
    %828 = vmatprep.subr.mxu0 0.0
    %829 = vmatpush1.msra.mxu0 0.0
    %830 = vmatprep.subr.mxu0 0.0
    %831 = vmatpush1.msra.mxu0 0.0
    %832 = vmatprep.subr.mxu0 0.0
    %833 = vmatpush1.msra.mxu0 0.0
    %834 = vmatprep.subr.mxu0 0.0
    %835 = vmatpush1.msra.mxu0 0.0
    %836 = vmatprep.subr.mxu0 0.0
    %837 = vmatpush1.msra.mxu0 0.0
    %838 = vmatprep.subr.mxu0 0.0
    %839 = vmatpush1.msra.mxu0 0.0
    %840 = vmatprep.subr.mxu0 0.0
    %841 = vmatpush1.msra.mxu0 0.0
    %842 = vmatprep.subr.mxu0 0.0
    %843 = vmatpush1.msra.mxu0 0.0
    %844 = vmatprep.subr.mxu0 0.0
    %845 = vmatpush1.msra.mxu0 0.0
    %846 = vmatprep.subr.mxu0 0.0
    %847 = vmatpush1.msra.mxu0 0.0
    %848 = vmatprep.mubr.f32.mxu0 0.0
    %849 = vmatmul.mubr.f32.gmra.mrb[0].mxu0 %v782
    %v850 = vpop.f32.mrb[0].mxu0
    %v851 = vadd.f32 0.0, %v850
    %v852 = vpop.f32.mrb[0].mxu0
    %853 = vdwg.mxu0
    %v855 = vrot.slane %v851, 2
    %v857 = vadd.f32 %v228, %v855
    %v858 = vtanh.pop %v857
    %vm859 = vcmask 261126
    %860 = vst.msk [vmem:[%s9 - $0x6] sm:$0xc0] %vm859, %v858
    %v861 = vld [vmem:[%s6] sm:$0xff]
    %v862 = vld [vmem:[%s6 + $0x8] sm:$0xff]
    %v863 = vld [vmem:[%s6 + $0x10] sm:$0xff]
    %v864 = vld [vmem:[%s6 + $0x18] sm:$0xff]
    %v865 = vld [vmem:[%s7] sm:$0x1]
    %v867 = vlaneseq
    %v868 = vshrl.u32 %v867, 7
    %v869 = vsub.s32 0, %v868
    %v870 = vrot.slane %v865, %v869
    %872 = vmatprep.subr.mxu0 0.0
    %873 = vmatpush1.msra.mxu0 %v861
    %874 = vmatprep.subr.mxu0 0.0
    %875 = vmatpush1.msra.mxu0 %v862
    %876 = vmatprep.subr.mxu0 0.0
    %877 = vmatpush1.msra.mxu0 %v863
    %878 = vmatprep.subr.mxu0 0.0
    %879 = vmatpush1.msra.mxu0 %v864
    %880 = vmatprep.subr.mxu0 0.0
    %881 = vmatpush1.msra.mxu0 0.0
    %882 = vmatprep.subr.mxu0 0.0
    %883 = vmatpush1.msra.mxu0 0.0
    %884 = vmatprep.subr.mxu0 0.0
    %885 = vmatpush1.msra.mxu0 0.0
    %886 = vmatprep.subr.mxu0 0.0
    %887 = vmatpush1.msra.mxu0 0.0
    %888 = vmatprep.subr.mxu0 0.0
    %889 = vmatpush1.msra.mxu0 0.0
    %890 = vmatprep.subr.mxu0 0.0
    %891 = vmatpush1.msra.mxu0 0.0
    %892 = vmatprep.subr.mxu0 0.0
    %893 = vmatpush1.msra.mxu0 0.0
    %894 = vmatprep.subr.mxu0 0.0
    %895 = vmatpush1.msra.mxu0 0.0
    %896 = vmatprep.subr.mxu0 0.0
    %897 = vmatpush1.msra.mxu0 0.0
    %898 = vmatprep.subr.mxu0 0.0
    %899 = vmatpush1.msra.mxu0 0.0
    %900 = vmatprep.subr.mxu0 0.0
    %901 = vmatpush1.msra.mxu0 0.0
    %902 = vmatprep.subr.mxu0 0.0
    %903 = vmatpush1.msra.mxu0 0.0
    %904 = vmatprep.subr.mxu0 0.0
    %905 = vmatpush1.msra.mxu0 0.0
    %906 = vmatprep.subr.mxu0 0.0
    %907 = vmatpush1.msra.mxu0 0.0
    %908 = vmatprep.subr.mxu0 0.0
    %909 = vmatpush1.msra.mxu0 0.0
    %910 = vmatprep.subr.mxu0 0.0
    %911 = vmatpush1.msra.mxu0 0.0
    %912 = vmatprep.subr.mxu0 0.0
    %913 = vmatpush1.msra.mxu0 0.0
    %914 = vmatprep.subr.mxu0 0.0
    %915 = vmatpush1.msra.mxu0 0.0
    %916 = vmatprep.subr.mxu0 0.0
    %917 = vmatpush1.msra.mxu0 0.0
    %918 = vmatprep.subr.mxu0 0.0
    %919 = vmatpush1.msra.mxu0 0.0
    %920 = vmatprep.subr.mxu0 0.0
    %921 = vmatpush1.msra.mxu0 0.0
    %922 = vmatprep.subr.mxu0 0.0
    %923 = vmatpush1.msra.mxu0 0.0
    %924 = vmatprep.subr.mxu0 0.0
    %925 = vmatpush1.msra.mxu0 0.0
    %926 = vmatprep.subr.mxu0 0.0
    %927 = vmatpush1.msra.mxu0 0.0
    %928 = vmatprep.subr.mxu0 0.0
    %929 = vmatpush1.msra.mxu0 0.0
    %930 = vmatprep.subr.mxu0 0.0
    %931 = vmatpush1.msra.mxu0 0.0
    %932 = vmatprep.subr.mxu0 0.0
    %933 = vmatpush1.msra.mxu0 0.0
    %934 = vmatprep.subr.mxu0 0.0
    %935 = vmatpush1.msra.mxu0 0.0
    %936 = vmatprep.mubr.f32.mxu0 0.0
    %937 = vmatmul.mubr.f32.gmra.mrb[0].mxu0 %v312
    %v938 = vpop.f32.mrb[0].mxu0
    %v939 = vadd.f32 %v870, %v938
    %v940 = vpop.f32.mrb[0].mxu0
    %941 = vdwg.mxu0
    %vm942 = vcmask 1041408
    %v943 = vsel %vm942, %v939, -inf
    %944 = vmax.xlane.f32.xlu0 %v943
    %v945 = vpop.xlane.xlu0 %944
    %v946 = vsub.f32 %v939, %v945
    %v947 = vmul.f32 %v946, 1.442695
    %v948 = vpow.pop %v947
    %v949 = vsel %vm942, %v948, 0.0
    %950 = vadd.xlane.f32.xlu0 %v949
    %v951 = vpop.xlane.xlu0 %950
    %v952 = vlog2.pop %v951
    %v953 = vmul.f32 %v952, 0.6931472
    %v954 = vadd.f32 %v953, %v945
    %v955 = vsub.f32 %v939, %v954
    %956 = vst [vmem:[#allocation2] sm:$0x3] %v955
    // Predicated region
    $region34: #{decoder_forward.1} parent=1 // pred_check
      _
    $region35: #{decoder_forward.1} parent=1 // pred_check_branch
      %958 = sbr.rel (0) target = $region37
    $region36: #{decoder_forward.1} parent=1 // pred_region
      %s960 = ssub.s32 32, 32
      %961 = vsyncadd [#allocation3], %s960
      %s963 = sshll.u32 [#allocation2], 4
      %s964 = int_to_ptr.vmem [resolvable:$true] %s963
      %966 = dma.vmem_to_hbm [thread:$0]  %s964, 32, %s8, [#allocation3]
    $region37: #{decoder_forward.1} parent=1 // pred_fallthru
      _
    // Predicated region
    $region38: #{decoder_forward.1} parent=1 // pred_check
      _
    $region39: #{decoder_forward.1} parent=1 // pred_check_branch
      %968 = sbr.rel (0) target = $region41
    $region40: #{decoder_forward.1} parent=1 // pred_region
      _
    $region41: #{decoder_forward.1} parent=1 // pred_fallthru
      _
    // Predicated region
    $region42: #{decoder_forward.1} parent=1 // pred_check
      _
    $region43: #{decoder_forward.1} parent=1 // pred_check_branch
      %970 = sbr.rel (0) target = $region45
    $region44: #{decoder_forward.1} parent=1 // pred_region
      %971 = dma.done [#allocation3], 32
    $region45: #{decoder_forward.1} parent=1 // pred_fallthru
      _
    // Predicated region
    $region46: #{decoder_forward.1} parent=1 // pred_check
      _
    $region47: #{decoder_forward.1} parent=1 // pred_check_branch
      %973 = sbr.rel (0) target = $region49
    $region48: #{decoder_forward.1} parent=1 // pred_region
      _
    $region49: #{decoder_forward.1} parent=1 // pred_fallthru
      _
    %974 = vsyncpa [#allocation3], 1

</llo_original>
